<compile_context>
chip_gen: v7x
topology: tpu7x:2x2x1
jax: 0.10.0
libtpu: 0.0.40
codegen_flags: <defaults>
</compile_context>

<pallas_src>
import functools
import math

import jax
import jax.numpy as jnp
from jax.experimental import pallas as pl
from jax.experimental.pallas import tpu as pltpu


# ---------------------------------------------------------------------------
# helpers
# ---------------------------------------------------------------------------
def _round_up(a, b):
    return ((a + b - 1) // b) * b


def _hw_budget():
    """(per-input block budget in f32 elements, vmem_limit_bytes).

    v5e/v6e (128 MiB VMEM per core): 8 MiB blocks, 64 MiB scoped limit.
    v7x (64 MiB VMEM per core) / unknown: 4 MiB blocks, 48 MiB scoped limit.
    """
    try:
        vmem_cap = int(pltpu.get_tpu_info().vmem_capacity_bytes)
    except Exception:
        vmem_cap = 64 * 1024 * 1024
    if vmem_cap >= 100 * 1024 * 1024:
        return 2 * 1024 * 1024, 64 * 1024 * 1024
    return 1024 * 1024, 48 * 1024 * 1024


def _abs_pow(d, p):
    """|d| ** p using VPU-only paths for common p (no EUP pow when avoidable)."""
    if p == 1:
        return jnp.abs(d)
    if p == 2:
        return d * d
    if p == 0.5:
        return jnp.sqrt(jnp.abs(d))
    if p == 1.5:
        a = jnp.abs(d)
        return a * jnp.sqrt(a)
    if float(p).is_integer() and 3 <= int(p) <= 16:
        n = int(p)
        if n % 2 == 0:            # even p: square once, halve the exponent
            base, n = d * d, n // 2
        else:
            base = jnp.abs(d)
        result = None             # exponentiation by squaring (VPU multiplies)
        while n:
            if n & 1:
                result = base if result is None else result * base
            n >>= 1
            if n:
                base = base * base
        return result
    return jnp.abs(d) ** p  # TODO(synk): general fractional p falls back to EUP pow.


def _root(s, p):
    if p == 1:
        return s
    if p == 2:
        return jnp.sqrt(s)
    if p == 0.5:
        return s * s
    return s ** (1.0 / p)


def _factor_flat(n):
    """Free (rows, cols) factorization of a flat length-n vector that fills
    sublanes (rows >= 8) and keeps the lane axis a multiple of 128 if possible."""
    for c in (512, 256, 128, 1024, 2048, 64, 32, 16, 8):
        if n % c == 0 and n // c >= 8:
            return n // c, c
    for c in (512, 256, 128, 1024, 2048, 64, 32, 16, 8, 4, 2):
        if n % c == 0:
            return n // c, c
    return 1, n


# ---------------------------------------------------------------------------
# kernel 1: reduction along the LAST (lane) axis of a 2-D view
# ---------------------------------------------------------------------------
def _row_lp_kernel_single(x_ref, y_ref, o_ref, *, p, apply_root, scale):
    """Whole reduction axis fits one block: no scratch, single output store."""
    diff = x_ref[...].astype(jnp.float32) - y_ref[...].astype(jnp.float32)
    s = jnp.sum(_abs_pow(diff, p), axis=-1, keepdims=True)
    if apply_root:
        s = _root(s, p)
    if scale != 1.0:
        s = s * scale
    o_ref[...] = s.astype(o_ref.dtype)


def _row_lp_kernel_multi(x_ref, y_ref, o_ref, acc_ref, *, p, mask_cols, d_total,
                         apply_root, scale):
    """Grid = (row_tiles, k_tiles); k (reduction) axis last / "arbitrary".
    acc_ref: (tm, 1) f32 accumulator, resident across the k axis."""
    k = pl.program_id(1)
    nk = pl.num_programs(1)

    @pl.when(k == 0)
    def _init():
        acc_ref[...] = jnp.zeros_like(acc_ref)

    diff = x_ref[...].astype(jnp.float32) - y_ref[...].astype(jnp.float32)
    if mask_cols:
        # Mask only on the final k step: the streaming steps stay mask-free.
        @pl.when(k < nk - 1)
        def _acc_stream():
            acc_ref[...] += jnp.sum(_abs_pow(diff, p), axis=-1, keepdims=True)

        @pl.when(k == nk - 1)
        def _acc_tail():
            tk = x_ref.shape[1]
            col = jax.lax.broadcasted_iota(jnp.int32, diff.shape, 1) + k * tk
            d2 = jnp.where(col < d_total, diff, 0.0)
            acc_ref[...] += jnp.sum(_abs_pow(d2, p), axis=-1, keepdims=True)
    else:
        acc_ref[...] += jnp.sum(_abs_pow(diff, p), axis=-1, keepdims=True)

    @pl.when(k == nk - 1)
    def _finalize():
        s = acc_ref[...]
        if apply_root:
            s = _root(s, p)
        if scale != 1.0:
            s = s * scale
        o_ref[...] = s.astype(o_ref.dtype)


def _lp_rows(x2d, y2d, p, *, apply_root, scale, out_dtype):
    """Per-row Lp reduction of (x2d - y2d) along the last axis of an (M, D) view."""
    M, D = x2d.shape
    blk_elems, vmem_limit = _hw_budget()

    tk = D if D <= 2048 else 2048                    # lane (reduction) tile
    budget_tm = max(8, (blk_elems // tk // 8) * 8)   # ~4-8 MiB f32 per input block
    tm = min(_round_up(M, 8), budget_tm)
    # Force >= 2 row tiles when possible so both TensorCores run (v7x megacore).
    if M > 8 and pl.cdiv(M, tm) < 2:
        tm = max(8, _round_up(pl.cdiv(M, 2), 8))

    single_k = pl.cdiv(D, tk) == 1
    # TODO(synk): optionally emit a lane-dense (row_tiles, tm) output slab instead
    # of the (M, 1) column if the narrow vst.msk stores ever show up in profiles.
    if single_k:
        kernel = functools.partial(_row_lp_kernel_single, p=p,
                                   apply_root=apply_root, scale=scale)
        grid = (pl.cdiv(M, tm),)
        out = pl.pallas_call(
            kernel,
            out_shape=jax.ShapeDtypeStruct((M, 1), out_dtype),
            grid_spec=pltpu.PrefetchScalarGridSpec(
                num_scalar_prefetch=0,
                grid=grid,
                in_specs=[pl.BlockSpec((tm, tk), lambda i: (i, 0)),
                          pl.BlockSpec((tm, tk), lambda i: (i, 0))],
                out_specs=pl.BlockSpec((tm, 1), lambda i: (i, 0)),
            ),
            compiler_params=pltpu.CompilerParams(
                dimension_semantics=("parallel",),
                vmem_limit_bytes=vmem_limit),
        )(x2d, y2d)
        return out[:, 0]

    mask_cols = (D % tk) != 0
    kernel = functools.partial(_row_lp_kernel_multi, p=p, mask_cols=mask_cols,
                               d_total=D, apply_root=apply_root, scale=scale)
    grid = (pl.cdiv(M, tm), pl.cdiv(D, tk))
    out = pl.pallas_call(
        kernel,
        out_shape=jax.ShapeDtypeStruct((M, 1), out_dtype),
        grid_spec=pltpu.PrefetchScalarGridSpec(
            num_scalar_prefetch=0,
            grid=grid,
            in_specs=[pl.BlockSpec((tm, tk), lambda i, k: (i, k)),
                      pl.BlockSpec((tm, tk), lambda i, k: (i, k))],
            out_specs=pl.BlockSpec((tm, 1), lambda i, k: (i, 0)),
            scratch_shapes=[pltpu.VMEM((tm, 1), jnp.float32)],
        ),
        compiler_params=pltpu.CompilerParams(
            dimension_semantics=("parallel", "arbitrary"),
            vmem_limit_bytes=vmem_limit),
    )(x2d, y2d)
    return out[:, 0]


# ---------------------------------------------------------------------------
# kernel 2: reduction along a MIDDLE axis of an (O, D, I) view (no transpose)
# ---------------------------------------------------------------------------
def _mid_lp_kernel_single(x_ref, y_ref, o_ref, *, p, scale):
    """Whole reduction axis fits one block: no scratch, single output store."""
    diff = x_ref[...].astype(jnp.float32) - y_ref[...].astype(jnp.float32)
    s = _root(jnp.sum(_abs_pow(diff, p), axis=1), p)
    if scale != 1.0:
        s = s * scale
    o_ref[...] = s.astype(o_ref.dtype)


def _mid_lp_kernel_multi(x_ref, y_ref, o_ref, acc_ref, *, p, mask_d, d_total, scale):
    """Grid = (o_tiles, i_tiles, k_tiles); k is the reduction axis (last).
    acc_ref: (tO, tI) f32 accumulator -> lane-dense output tile."""
    k = pl.program_id(2)
    nk = pl.num_programs(2)

    @pl.when(k == 0)
    def _init():
        acc_ref[...] = jnp.zeros_like(acc_ref)

    diff = x_ref[...].astype(jnp.float32) - y_ref[...].astype(jnp.float32)
    if mask_d:
        # Mask only on the final k step.
        @pl.when(k < nk - 1)
        def _acc_stream():
            acc_ref[...] += jnp.sum(_abs_pow(diff, p), axis=1)

        @pl.when(k == nk - 1)
        def _acc_tail():
            td = x_ref.shape[1]
            dd = jax.lax.broadcasted_iota(jnp.int32, diff.shape, 1) + k * td
            d2 = jnp.where(dd < d_total, diff, 0.0)
            acc_ref[...] += jnp.sum(_abs_pow(d2, p), axis=1)
    else:
        acc_ref[...] += jnp.sum(_abs_pow(diff, p), axis=1)

    @pl.when(k == nk - 1)
    def _finalize():
        s = _root(acc_ref[...], p)
        if scale != 1.0:
            s = s * scale
        o_ref[...] = s.astype(o_ref.dtype)


def _lp_middle(x3d, y3d, p, *, scale, out_dtype):
    """Lp norm of (x3d - y3d) reduced over the middle axis of (O, D, I)."""
    O, D, I = x3d.shape
    blk_elems, vmem_limit = _hw_budget()

    tI = I if I <= 2048 else 2048          # long lane runs -> fewer DMA descriptors
    tD = D if D <= 256 else 256            # sublane (reduction) tile
    rem = max(1, blk_elems // (tD * tI))   # ~4-8 MiB f32 per input block budget
    if O <= 8:
        tO = O
    else:
        tO = min(_round_up(O, 8), max(8, (rem // 8) * 8))
    # Force >= 2 parallel (o, i) steps when possible so both TensorCores run.
    if pl.cdiv(O, tO) * pl.cdiv(I, tI) < 2:
        if O > 8:
            tO = max(8, _round_up(pl.cdiv(O, 2), 8))
        elif I > 128:
            tI = max(128, _round_up(pl.cdiv(I, 2), 128))

    single_k = pl.cdiv(D, tD) == 1
    if single_k:
        kernel = functools.partial(_mid_lp_kernel_single, p=p, scale=scale)
        grid = (pl.cdiv(O, tO), pl.cdiv(I, tI))
        return pl.pallas_call(
            kernel,
            out_shape=jax.ShapeDtypeStruct((O, I), out_dtype),
            grid_spec=pltpu.PrefetchScalarGridSpec(
                num_scalar_prefetch=0,
                grid=grid,
                in_specs=[pl.BlockSpec((tO, tD, tI), lambda o, i: (o, 0, i)),
                          pl.BlockSpec((tO, tD, tI), lambda o, i: (o, 0, i))],
                out_specs=pl.BlockSpec((tO, tI), lambda o, i: (o, i)),
            ),
            compiler_params=pltpu.CompilerParams(
                dimension_semantics=("parallel", "parallel"),
                vmem_limit_bytes=vmem_limit),
        )(x3d, y3d)

    mask_d = (D % tD) != 0
    kernel = functools.partial(_mid_lp_kernel_multi, p=p, mask_d=mask_d,
                               d_total=D, scale=scale)
    grid = (pl.cdiv(O, tO), pl.cdiv(I, tI), pl.cdiv(D, tD))
    return pl.pallas_call(
        kernel,
        out_shape=jax.ShapeDtypeStruct((O, I), out_dtype),
        grid_spec=pltpu.PrefetchScalarGridSpec(
            num_scalar_prefetch=0,
            grid=grid,
            in_specs=[pl.BlockSpec((tO, tD, tI), lambda o, i, k: (o, k, i)),
                      pl.BlockSpec((tO, tD, tI), lambda o, i, k: (o, k, i))],
            out_specs=pl.BlockSpec((tO, tI), lambda o, i, k: (o, i)),
            scratch_shapes=[pltpu.VMEM((tO, tI), jnp.float32)],
        ),
        compiler_params=pltpu.CompilerParams(
            dimension_semantics=("parallel", "parallel", "arbitrary"),
            vmem_limit_bytes=vmem_limit),
    )(x3d, y3d)


# ---------------------------------------------------------------------------
# wrapper: scale * (x - y).norm(p=p, dim=dim)
# ---------------------------------------------------------------------------
def lp_distance(x, y, dim=None, p=2, scale=1.0):
    p = float(p)
    if not (p > 0.0) or math.isinf(p):
        # TODO(synk): p=0 / +-inf norms (count-nonzero, max, min) need a different
        # accumulator; not implemented here.
        raise NotImplementedError(f"lp_distance: unsupported p={p}")

    x = jnp.asarray(x)
    y = jnp.asarray(y)
    out_dtype = jnp.result_type(x.dtype, y.dtype)
    if not jnp.issubdtype(out_dtype, jnp.floating):
        out_dtype = jnp.float32            # norms of integer inputs are floating
    if x.shape != y.shape:
        # TODO(synk): express broadcasting via the BlockSpec index_map instead of
        # materializing the broadcast in HBM (only hit when shapes differ).
        bshape = jnp.broadcast_shapes(x.shape, y.shape)
        x = jnp.broadcast_to(x, bshape)
        y = jnp.broadcast_to(y, bshape)

    if dim is None:
        # Two-stage full reduction: per-row sum(|diff|^p) in-kernel over a free,
        # sublane-filling 2-D view; tiny combine + root (+ scale) in JAX.
        rows, cols = _factor_flat(x.size)
        row_sums = _lp_rows(x.reshape(rows, cols), y.reshape(rows, cols), p,
                            apply_root=False, scale=1.0, out_dtype=jnp.float32)
        total = jnp.sum(row_sums)
        return (_root(total, p) * scale).astype(out_dtype)

    ndim = x.ndim
    dim = dim % ndim
    shape = x.shape
    out_shape = shape[:dim] + shape[dim + 1:]

    if dim == ndim - 1:
        # reduce along the last axis: free reshape to (rows, D), lane reduction
        d = shape[-1]
        m = math.prod(shape[:-1])
        res = _lp_rows(x.reshape(m, d), y.reshape(m, d), p,
                       apply_root=True, scale=scale, out_dtype=out_dtype)
        return res.reshape(out_shape)

    # reduce along a middle axis: free reshape to (O, D, I) -- no moveaxis copy
    o = math.prod(shape[:dim])
    d = shape[dim]
    inner = math.prod(shape[dim + 1:])
    res = _lp_middle(x.reshape(o, d, inner), y.reshape(o, d, inner), p,
                     scale=scale, out_dtype=out_dtype)
    return res.reshape(out_shape)


# ---------------------------------------------------------------------------
# module mirrors (Metric / SumMetric / LpMetric / ScaleMetric)
# ---------------------------------------------------------------------------
class Metric:
    """Mirror of the PyTorch Metric base class (composable metrics)."""

    def forward(self, x, y, dim=None):
        raise NotImplementedError

    def __call__(self, x, y, dim=None):
        return self.forward(x, y, dim=dim)

    def __add__(self, other):
        return SumMetric(self, other)

    def __rmul__(self, scalar):
        return ScaleMetric(self, scalar)


class SumMetric(Metric):
    def __init__(self, metric1, metric2):
        self.metric1 = metric1
        self.metric2 = metric2

    def forward(self, x, y, dim=None):
        return self.metric1(x, y, dim=dim) + self.metric2(x, y, dim=dim)


class LpMetric(Metric):
    """Base metric: (x - y).norm(p=p, dim=dim), computed by the Pallas kernels."""

    def __init__(self, p=2):
        self.p = p
        self.norm_const = 0.0

    def forward(self, x, y, dim=None, scale=1.0):
        return lp_distance(x, y, dim=dim, p=self.p, scale=scale)


class ScaleMetric(Metric):
    """factor * metric1(x, y, dim).  When the wrapped metric is an LpMetric the
    factor is fused into the Pallas kernel's finalize step (applied only to the
    tiny reduced tile), so no extra pass is spent on the multiply."""

    def __init__(self, metric1, factor):
        # tolerate the swapped argument order used by Metric.__rmul__ upstream
        if isinstance(metric1, (int, float)) and isinstance(factor, Metric):
            metric1, factor = factor, metric1
        self.metric1 = metric1
        self.factor = factor

    def forward(self, x, y, dim=None):
        if isinstance(self.metric1, LpMetric) and isinstance(self.factor, (int, float)):
            return self.metric1.forward(x, y, dim=dim, scale=float(self.factor))
        return self.factor * self.metric1(x, y, dim=dim)


# ---------------------------------------------------------------------------
# demo / self-check
# ---------------------------------------------------------------------------
if __name__ == "__main__":
    key = jax.random.PRNGKey(0)
    kx, ky, kx2, ky2 = jax.random.split(key, 4)

    # NCHW-like small inputs
    x = jax.random.normal(kx, (2, 4, 16, 16), dtype=jnp.float32)
    y = jax.random.normal(ky, (2, 4, 16, 16), dtype=jnp.float32)

    factor = 1.5
    metric = ScaleMetric(LpMetric(p=2), factor)   # the module under test

    out_dim1 = metric(x, y, dim=1)     # middle-axis kernel     -> (2, 16, 16)
    out_last = metric(x, y, dim=-1)    # last-axis (row) kernel -> (2, 4, 16)
    out_all = metric(x, y, dim=None)   # two-stage full reduce  -> scalar
    jax.block_until_ready((out_dim1, out_last, out_all))

    d = x - y
    ref_dim1 = factor * jnp.linalg.norm(d, axis=1)
    ref_last = factor * jnp.linalg.norm(d, axis=-1)
    ref_all = factor * jnp.sqrt(jnp.sum(d * d))
    assert out_dim1.shape == (2, 16, 16)
    assert out_last.shape == (2, 4, 16)
    assert jnp.allclose(out_dim1, ref_dim1, atol=1e-4, rtol=1e-4)
    assert jnp.allclose(out_last, ref_last, atol=1e-4, rtol=1e-4)
    assert jnp.allclose(out_all, ref_all, atol=1e-3, rtol=1e-4)

    # __rmul__ path + a shape exercising reduction-axis k-tiling (D > 2048),
    # last-step-only tail masking and a non-multiple-of-8 row count with >=2
    # parallel row tiles.
    x2 = jax.random.normal(kx2, (20, 3000), dtype=jnp.float32)
    y2 = jax.random.normal(ky2, (20, 3000), dtype=jnp.float32)
    m_l1 = 2.0 * LpMetric(p=1)          # -> ScaleMetric via Metric.__rmul__
    out2 = m_l1(x2, y2, dim=1)
    jax.block_until_ready(out2)
    ref2 = 2.0 * jnp.sum(jnp.abs(x2 - y2), axis=1)
    assert out2.shape == (20,)
    assert jnp.allclose(out2, ref2, atol=1e-3, rtol=1e-4)

    # integer-p square-chain path (p=3)
    out3 = LpMetric(p=3)(x2, y2, dim=1)
    jax.block_until_ready(out3)
    ref3 = jnp.sum(jnp.abs(x2 - y2) ** 3, axis=1) ** (1.0 / 3.0)
    assert jnp.allclose(out3, ref3, atol=1e-3, rtol=1e-4)

    # integer-dtype inputs must produce a floating norm
    xi = (jnp.arange(8 * 128, dtype=jnp.int32).reshape(8, 128) % 7)
    yi = jnp.zeros((8, 128), dtype=jnp.int32)
    out_i = LpMetric(p=2)(xi, yi, dim=-1)
    jax.block_until_ready(out_i)
    ref_i = jnp.sqrt(jnp.sum((xi - yi).astype(jnp.float32) ** 2, axis=-1))
    assert jnp.issubdtype(out_i.dtype, jnp.floating)
    assert jnp.allclose(out_i, ref_i, atol=1e-3, rtol=1e-4)

    # SumMetric composition on top of the fused kernels.
    both = metric + metric
    out_sum = both(x, y, dim=1)
    jax.block_until_ready(out_sum)
    assert jnp.allclose(out_sum, 2.0 * ref_dim1, atol=1e-4, rtol=1e-4)

    print("KERNEL_OK")
</pallas_src>

<mosaic_0001>
module attributes {stable_mosaic.version = 11 : i64} {
  func.func @_mid_lp_kernel_single(%arg0: i32, %arg1: i32, %arg2: memref<2x4x128xf32, #tpu.memory_space<vmem>>, %arg3: memref<2x4x128xf32, #tpu.memory_space<vmem>>, %arg4: memref<2x128xf32, #tpu.memory_space<vmem>>) attributes {dimension_semantics = [#tpu.dimension_semantics<parallel>, #tpu.dimension_semantics<parallel>], iteration_bounds = array<i64: 1, 2>, scalar_prefetch = 0 : i64, scratch_operands = 0 : i64, tpu.core_type = #tpu.core_type<tc>, window_params = [{transform_indices = @transform_0, window_bounds = array<i64: 2, 4, 128>}, {transform_indices = @transform_1, window_bounds = array<i64: 2, 4, 128>}, {transform_indices = @transform_2, window_bounds = array<i64: 2, 128>}]} {
    %c0 = arith.constant 0 : index
    %c0_0 = arith.constant 0 : index
    %c0_1 = arith.constant 0 : index
    %0 = vector.load %arg2[%c0, %c0_0, %c0_1] : memref<2x4x128xf32, #tpu.memory_space<vmem>>, vector<2x4x128xf32>
    %c0_2 = arith.constant 0 : index
    %c0_3 = arith.constant 0 : index
    %c0_4 = arith.constant 0 : index
    %1 = vector.load %arg3[%c0_2, %c0_3, %c0_4] : memref<2x4x128xf32, #tpu.memory_space<vmem>>, vector<2x4x128xf32>
    %2 = arith.subf %0, %1 : vector<2x4x128xf32>
    %3 = arith.mulf %2, %2 : vector<2x4x128xf32>
    %cst = arith.constant dense<0.000000e+00> : vector<2x128xf32>
    %4 = vector.multi_reduction <add>, %3, %cst [1] : vector<2x4x128xf32> to vector<2x128xf32>
    %5 = math.sqrt %4 : vector<2x128xf32>
    %cst_5 = arith.constant 1.500000e+00 : f32
    %6 = vector.broadcast %cst_5 : f32 to vector<2x128xf32>
    %7 = arith.mulf %5, %6 : vector<2x128xf32>
    %c0_6 = arith.constant 0 : index
    %c0_7 = arith.constant 0 : index
    %8 = vector.load %arg4[%c0_6, %c0_7] : memref<2x128xf32, #tpu.memory_space<vmem>>, vector<2x128xf32>
    tpu.vector_store %arg4[%c0_6, %c0_7], %7 {strides = array<i32>} : memref<2x128xf32, #tpu.memory_space<vmem>>, vector<2x128xf32>,
    return
  }
  func.func @transform_0(%arg0: i32, %arg1: i32) -> (i32, i32, i32) {
    %c0_i32 = arith.constant 0 : i32
    %c0_i32_0 = arith.constant 0 : i32
    return %arg0, %c0_i32, %arg1 : i32, i32, i32
  }
  func.func @transform_1(%arg0: i32, %arg1: i32) -> (i32, i32, i32) {
    %c0_i32 = arith.constant 0 : i32
    %c0_i32_0 = arith.constant 0 : i32
    return %arg0, %c0_i32, %arg1 : i32, i32, i32
  }
  func.func @transform_2(%arg0: i32, %arg1: i32) -> (i32, i32) {
    %c0_i32 = arith.constant 0 : i32
    return %arg0, %arg1 : i32, i32
  }
}

</mosaic_0001>

<llo_original>
// kernel: tpu_custom_call.1
$region0: #{tpu_custom_call.1}
  #allocation0 [shape = 'u32[]', space=smem, size = 0x4, offset = 0x4, fixed_abs, tag = 'smem constant byte address 0x4 - core index']
  #allocation1 [shape = 'u32[144,128]{1,0:T(1,128)}', space=vmem, size = 0x12000, scoped, tag = 'internal scratch']
  %s0 = inlined_call_operand.hbm [shape: f32[2,4,256], index: 0, kind: input, shape index: {}]
  %s1 = inlined_call_operand.hbm [shape: f32[2,4,256], index: 1, kind: input, shape index: {}]
  %s2 = inlined_call_operand.hbm [shape: f32[2,256], index: 2, kind: output, shape index: {}]
  %s3 = sld [smem:[#allocation0]]
  $region49: #{tpu_custom_call.1} parent=0
    _
  %s5 = ssub.s32 1, %s3
  %s6 = scalar_select 0, %s5, %s3
  $region1: #{tpu_custom_call.1} parent=0
    #allocation2 [shape = 'u8[8192]{0}', space=vmem, size = 0x2000, scoped, tag = 'input window, operand 0']
    #allocation3 [shape = 's32[2]{0}', space=sflag, size = 0x8, scoped, tag = 'scoped memory for tpu_custom_call.1']
    #allocation4 [shape = 's32[2]{0}', space=sflag, size = 0x8, scoped, tag = 'scoped memory for tpu_custom_call.1']
    #allocation5 [shape = 'u8[8192]{0}', space=vmem, size = 0x2000, scoped, tag = 'input window, operand 1']
    #allocation6 [shape = 's32[2]{0}', space=sflag, size = 0x8, scoped, tag = 'scoped memory for tpu_custom_call.1']
    #allocation7 [shape = 'u8[2048]{0}', space=vmem, size = 0x800, scoped, tag = 'output window, operand 0']
    %7 = vsyncpa [#allocation3], 0
    %s8 = scalar_lea.sflag [#allocation3], 1
    %9 = vsyncpa %s8, 0
    %10 = vsyncpa [#allocation6], 0
    %s11 = scalar_lea.sflag [#allocation6], 1
    %12 = vsyncpa %s11, 0
    %13 = vsyncpa [#allocation4], 0
    %s14 = scalar_lea.sflag [#allocation4], 1
    %15 = vsyncpa %s14, 0
    loop: start=0, step=1, limit=4
    $region2: #{tpu_custom_call.1} parent=1 // loop_pre_header
      _
    $region3: #{tpu_custom_call.1} parent=1 // loop_header
      %s17 = sphi 0, %s21
      %p18 = scmp.ge.s32.totalorder %s17, 4
      %s24 = sphi 0, %s36
      %s25 = sphi 0, %s32
      %s26 = sphi 0, %s24
      %s27 = sphi 0, %s25
      %s28 = sphi 0, %s26
      %s29 = sphi 0, %s27
      %s41 = sphi 0, %s43
      %s44 = sphi 0, %s41
      %s45 = sphi 0, %s44
      %s61 = sphi 0, %s45
      %s69 = sphi 0, %s71
      %s72 = sphi 0, %s69
      %s73 = sphi 0, %s72
      %s89 = sphi 0, %s73
      %s97 = sphi 0, %s99
      %s100 = sphi 0, %s97
      %s101 = sphi 0, %s100
      %s117 = sphi 0, %s101
    $region4: #{tpu_custom_call.1} parent=1 // loop_header_branch
      %20 = sbr.rel (%p18) target = $region8
    $region5: #{tpu_custom_call.1} parent=1 // loop_body
      %s22 = ssub.s32 %s17, 1
      %s23 = ssub.s32 %s17, 2
      %s30 = sadd.s32 1, %s25
      %p31 = scmp.ge.s32.totalorder %s30, 2
      %s32 = scalar_select %p31, 0, %s30
      %s33 = sadd.s32 1, %s24
      %s34 = scalar_select %p31, %s33, %s24
      %p35 = scmp.ge.s32.totalorder %s34, 1
      %s36 = scalar_select %p35, 0, %s34
      %s37 = ssub.s32 %s24, %s36
      %s38 = ssub.s32 %s25, %s32
      %s39 = sor.u32 %s37, %s38
      %p40 = scmp.eq.s32.totalorder %s39, 0
      %s42 = sadd.s32 %s41, 1
      %s43 = scalar_select %p40, %s41, %s42
      %p46 = pneg %p40
      %p47 = scmp.eq.s32.totalorder %s17, 1
      %p48 = por %p46, %p47
      %p49 = scmp.ne.s32.totalorder %s41, %s44
      %p50 = scmp.eq.s32.totalorder %s17, 0
      %p51 = por %p49, %p50
      %p52 = scmp.ne.s32.totalorder %s41, %s44
      %p53 = scmp.eq.s32.totalorder %s22, 1
      %p54 = por %p52, %p53
      %p55 = scmp.ne.s32.totalorder %s44, %s45
      %p56 = scmp.eq.s32.totalorder %s22, 0
      %p57 = por %p55, %p56
      %p58 = scmp.ne.s32.totalorder %s44, %s45
      %p59 = scmp.eq.s32.totalorder %s23, 1
      %p60 = por %p58, %p59
      %p62 = scmp.ne.s32.totalorder %s45, %s61
      %p63 = scmp.eq.s32.totalorder %s23, 0
      %p64 = por %p62, %p63
      %s65 = ssub.s32 %s24, %s36
      %s66 = ssub.s32 %s25, %s32
      %s67 = sor.u32 %s65, %s66
      %p68 = scmp.eq.s32.totalorder %s67, 0
      %s70 = sadd.s32 %s69, 1
      %s71 = scalar_select %p68, %s69, %s70
      %p74 = pneg %p68
      %p75 = scmp.eq.s32.totalorder %s17, 1
      %p76 = por %p74, %p75
      %p77 = scmp.ne.s32.totalorder %s69, %s72
      %p78 = scmp.eq.s32.totalorder %s17, 0
      %p79 = por %p77, %p78
      %p80 = scmp.ne.s32.totalorder %s69, %s72
      %p81 = scmp.eq.s32.totalorder %s22, 1
      %p82 = por %p80, %p81
      %p83 = scmp.ne.s32.totalorder %s72, %s73
      %p84 = scmp.eq.s32.totalorder %s22, 0
      %p85 = por %p83, %p84
      %p86 = scmp.ne.s32.totalorder %s72, %s73
      %p87 = scmp.eq.s32.totalorder %s23, 1
      %p88 = por %p86, %p87
      %p90 = scmp.ne.s32.totalorder %s73, %s89
      %p91 = scmp.eq.s32.totalorder %s23, 0
      %p92 = por %p90, %p91
      %s93 = ssub.s32 %s24, %s36
      %s94 = ssub.s32 %s25, %s32
      %s95 = sor.u32 %s93, %s94
      %p96 = scmp.eq.s32.totalorder %s95, 0
      %s98 = sadd.s32 %s97, 1
      %s99 = scalar_select %p96, %s97, %s98
      %p102 = pneg %p96
      %p103 = scmp.eq.s32.totalorder %s17, 1
      %p104 = por %p102, %p103
      %p105 = scmp.ne.s32.totalorder %s97, %s100
      %p106 = scmp.eq.s32.totalorder %s17, 0
      %p107 = por %p105, %p106
      %p108 = scmp.ne.s32.totalorder %s97, %s100
      %p109 = scmp.eq.s32.totalorder %s22, 1
      %p110 = por %p108, %p109
      %p111 = scmp.ne.s32.totalorder %s100, %s101
      %p112 = scmp.eq.s32.totalorder %s22, 0
      %p113 = por %p111, %p112
      %p114 = scmp.ne.s32.totalorder %s100, %s101
      %p115 = scmp.eq.s32.totalorder %s23, 1
      %p116 = por %p114, %p115
      %p118 = scmp.ne.s32.totalorder %s101, %s117
      %p119 = scmp.eq.s32.totalorder %s23, 0
      %p120 = por %p118, %p119
      %p121 = scmp.le.s32.totalorder 1, %s17
      %p122 = scmp.lt.s32.totalorder %s17, 3
      %p123 = pnand %p121, %p122
      %p124 = pneg %p123
      // Predicated region
      $region9: #{tpu_custom_call.1} parent=5 // pred_check
        _
      $region10: #{tpu_custom_call.1} parent=5 // pred_check_branch
        %126 = sbr.rel (%p123) target = $region12
      $region11: #{tpu_custom_call.1} parent=5 // pred_region
        %s127 = ssub.s32 %s17, 1
      $region12: #{tpu_custom_call.1} parent=5 // pred_fallthru
        _
      %p128 = scmp.lt.s32.totalorder %s17, 2
      // Predicated region
      $region13: #{tpu_custom_call.1} parent=5 // pred_check
        %p129 = pneg %p128
      $region14: #{tpu_custom_call.1} parent=5 // pred_check_branch
        %131 = sbr.rel (%p129) target = $region16
      $region15: #{tpu_custom_call.1} parent=5 // pred_region
        // Predicated region
        $region17: #{tpu_custom_call.1} parent=15 // pred_check
          %p132 = pneg %p51
        $region18: #{tpu_custom_call.1} parent=15 // pred_check_branch
          %134 = sbr.rel (%p132) target = $region20
        $region19: #{tpu_custom_call.1} parent=15 // pred_region
          %s135 = sand.u32 %s41, 1
          %s136 = scalar_lea.sflag [#allocation3], %s135
          %s137 = sand.u32 %s41, 1
          %s138 = smul.addr %s137, 8
          %s139 = scalar_lea.vmem [#allocation2], %s138
          %s140 = smul.u32 2, %s24
          %s142 = ssub.s32 128, 128
          %143 = vsyncadd %s136, %s142
          %s144 = smul.addr %s140, 2
          %s145 = sadd.s32 %s25, %s144
          %s146 = smul.addr %s145, 64
          %s147 = scalar_lea.hbm %s0, %s146
          %s148 = sshll.u32 %s139, 4
          %s149 = int_to_ptr.vmem [resolvable:$true] %s148
          %154 = dma.hbm_to_vmem [thread:$0]  %s147, 128, %s149, %s136, 128, 64, 4
        $region20: #{tpu_custom_call.1} parent=15 // pred_fallthru
          _
        // Predicated region
        $region21: #{tpu_custom_call.1} parent=15 // pred_check
          %p155 = pneg %p79
        $region22: #{tpu_custom_call.1} parent=15 // pred_check_branch
          %157 = sbr.rel (%p155) target = $region24
        $region23: #{tpu_custom_call.1} parent=15 // pred_region
          %s158 = sand.u32 %s69, 1
          %s159 = scalar_lea.sflag [#allocation6], %s158
          %s160 = sand.u32 %s69, 1
          %s161 = smul.addr %s160, 8
          %s162 = scalar_lea.vmem [#allocation5], %s161
          %s163 = smul.u32 2, %s24
          %s165 = ssub.s32 128, 128
          %166 = vsyncadd %s159, %s165
          %s167 = smul.addr %s163, 2
          %s168 = sadd.s32 %s25, %s167
          %s169 = smul.addr %s168, 64
          %s170 = scalar_lea.hbm %s1, %s169
          %s171 = sshll.u32 %s162, 4
          %s172 = int_to_ptr.vmem [resolvable:$true] %s171
          %177 = dma.hbm_to_vmem [thread:$0]  %s170, 128, %s172, %s159, 128, 64, 4
        $region24: #{tpu_custom_call.1} parent=15 // pred_fallthru
          _
      $region16: #{tpu_custom_call.1} parent=5 // pred_fallthru
        _
      %p178 = scmp.le.s32.totalorder 1, %s17
      %p179 = scmp.lt.s32.totalorder %s17, 3
      %p180 = pnand %p178, %p179
      %p181 = pneg %p180
      // Predicated region
      $region25: #{tpu_custom_call.1} parent=5 // pred_check
        _
      $region26: #{tpu_custom_call.1} parent=5 // pred_check_branch
        %183 = sbr.rel (%p180) target = $region28
      $region27: #{tpu_custom_call.1} parent=5 // pred_region
        %s184 = ssub.s32 %s17, 1
        %s185 = sand.u32 %s44, 1
        %s186 = scalar_lea.sflag [#allocation3], %s185
        %s187 = sand.u32 %s44, 1
        %s188 = smul.addr %s187, 8
        %s189 = scalar_lea.vmem [#allocation2], %s188
        // Predicated region
        $region29: #{tpu_custom_call.1} parent=27 // pred_check
          %p190 = pneg %p57
        $region30: #{tpu_custom_call.1} parent=27 // pred_check_branch
          %192 = sbr.rel (%p190) target = $region32
        $region31: #{tpu_custom_call.1} parent=27 // pred_region
          %193 = dma.done %s186, 128
        $region32: #{tpu_custom_call.1} parent=27 // pred_fallthru
          _
        %s194 = sand.u32 %s72, 1
        %s195 = scalar_lea.sflag [#allocation6], %s194
        %s196 = sand.u32 %s72, 1
        %s197 = smul.addr %s196, 8
        %s198 = scalar_lea.vmem [#allocation5], %s197
        // Predicated region
        $region33: #{tpu_custom_call.1} parent=27 // pred_check
          %p199 = pneg %p85
        $region34: #{tpu_custom_call.1} parent=27 // pred_check_branch
          %201 = sbr.rel (%p199) target = $region36
        $region35: #{tpu_custom_call.1} parent=27 // pred_region
          %202 = dma.done %s195, 128
        $region36: #{tpu_custom_call.1} parent=27 // pred_fallthru
          _
        %s203 = sand.u32 %s44, 1
        %s204 = scalar_lea.sflag [#allocation3], %s203
        %s205 = sand.u32 %s44, 1
        %s206 = smul.addr %s205, 8
        %s207 = scalar_lea.vmem [#allocation2], %s206
        %p208 = pneg %p57
        %p209 = pneg %p54
        %s210 = sand.u32 %s72, 1
        %s211 = scalar_lea.sflag [#allocation6], %s210
        %s212 = sand.u32 %s72, 1
        %s213 = smul.addr %s212, 8
        %s214 = scalar_lea.vmem [#allocation5], %s213
        %p215 = pneg %p85
        %p216 = pneg %p82
        %p217 = pneg %p113
        %p218 = pneg %p110
        %s219 = sand.u32 %s100, 1
        %s220 = scalar_lea.sflag [#allocation4], %s219
        %s221 = sand.u32 %s100, 1
        %s222 = smul.addr %s221, 2
        %s223 = scalar_lea.vmem [#allocation7], %s222
        %s224 = smul.u32 2, %s26
        %s225 = smul.u32 2, %s26
        %v226 = vld [vmem:[%s189] sm:$0xf]
        %v227 = vld [vmem:[%s189 + $0x4] sm:$0xf]
        %v228 = vld [vmem:[%s198] sm:$0xf]
        %v229 = vld [vmem:[%s198 + $0x4] sm:$0xf]
        %v230 = vsub.f32 %v226, %v228
        %v231 = vsub.f32 %v227, %v229
        %v232 = vmul.f32 %v230, %v230
        %v233 = vmul.f32 %v231, %v231
        %vm234 = vcmask 1043456
        %v235 = vsel %vm234, %v232, 0.0
        %v236 = vrot.slane %v235, 4
        %v237 = vadd.f32 %v235, %v236
        %v238 = vrot.slane %v237, 2
        %v239 = vadd.f32 %v237, %v238
        %v240 = vrot.slane %v239, 1
        %v241 = vadd.f32 %v239, %v240
        %v242 = vsel %vm234, %v233, 0.0
        %v243 = vrot.slane %v242, 4
        %v244 = vadd.f32 %v242, %v243
        %v245 = vrot.slane %v244, 2
        %v246 = vadd.f32 %v244, %v245
        %v247 = vrot.slane %v246, 1
        %v248 = vadd.f32 %v246, %v247
        %v249 = vrsqrt.pop %v241
        %v250 = vmul.f32 %v241, %v249
        %vm251 = vcmp.eq.f32.partialorder %v241, inf
        %v252 = vsel %vm251, %v241, %v250
        %vm253 = vcmp.eq.f32.partialorder %v241, 0.0
        %v254 = vand.u32 %v241, 2147483648
        %v255 = vsel %vm253, %v254, %v252
        %v256 = vrsqrt.pop %v248
        %v257 = vmul.f32 %v248, %v256
        %vm258 = vcmp.eq.f32.partialorder %v248, inf
        %v259 = vsel %vm258, %v248, %v257
        %vm260 = vcmp.eq.f32.partialorder %v248, 0.0
        %v261 = vand.u32 %v248, 2147483648
        %v262 = vsel %vm260, %v261, %v259
        %v263 = vmul.f32 %v255, 1.5
        %v264 = vmul.f32 %v262, 1.5
        %vm267 = vcmask 1041409
        %v268 = vsel %vm267, %v264, %v263
        %270 = vst [vmem:[%s223] sm:$0x3] %v268
        %s271 = sand.u32 %s100, 1
        %s272 = scalar_lea.sflag [#allocation4], %s271
        %s273 = sand.u32 %s100, 1
        %s274 = smul.addr %s273, 2
        %s275 = scalar_lea.vmem [#allocation7], %s274
        // Predicated region
        $region37: #{tpu_custom_call.1} parent=27 // pred_check
          %p276 = pneg %p110
        $region38: #{tpu_custom_call.1} parent=27 // pred_check_branch
          %278 = sbr.rel (%p276) target = $region40
        $region39: #{tpu_custom_call.1} parent=27 // pred_region
          %s280 = ssub.s32 32, 32
          %281 = vsyncadd %s272, %s280
          %s282 = smul.addr %s26, 2
          %s283 = sadd.s32 %s27, %s282
          %s284 = smul.addr %s283, 32
          %s285 = scalar_lea.hbm %s2, %s284
          %s287 = sshll.u32 %s275, 4
          %s288 = int_to_ptr.vmem [resolvable:$true] %s287
          %290 = dma.vmem_to_hbm [thread:$0]  %s288, 32, %s285, %s272
        $region40: #{tpu_custom_call.1} parent=27 // pred_fallthru
          _
      $region28: #{tpu_custom_call.1} parent=5 // pred_fallthru
        _
      %p291 = scmp.le.s32.totalorder 2, %s17
      // Predicated region
      $region41: #{tpu_custom_call.1} parent=5 // pred_check
        %p292 = pneg %p291
      $region42: #{tpu_custom_call.1} parent=5 // pred_check_branch
        %294 = sbr.rel (%p292) target = $region44
      $region43: #{tpu_custom_call.1} parent=5 // pred_region
        %s295 = ssub.s32 %s17, 2
        // Predicated region
        $region45: #{tpu_custom_call.1} parent=43 // pred_check
          %p296 = pneg %p116
        $region46: #{tpu_custom_call.1} parent=43 // pred_check_branch
          %298 = sbr.rel (%p296) target = $region48
        $region47: #{tpu_custom_call.1} parent=43 // pred_region
          %s299 = sand.u32 %s101, 1
          %s300 = scalar_lea.sflag [#allocation4], %s299
          %s301 = sand.u32 %s101, 1
          %s302 = smul.addr %s301, 2
          %s303 = scalar_lea.vmem [#allocation7], %s302
          %304 = dma.done %s300, 32
        $region48: #{tpu_custom_call.1} parent=43 // pred_fallthru
          _
      $region44: #{tpu_custom_call.1} parent=5 // pred_fallthru
        _
    $region6: #{tpu_custom_call.1} parent=1 // loop_footer
      %s21 = sadd.s32 1, %s17
    $region7: #{tpu_custom_call.1} parent=1 // loop_footer_branch
      %16 = sbr.rel target = $region3
    $region8: #{tpu_custom_call.1} parent=1 // loop_exit
      _
    %305 = vsyncpa [#allocation3], 1
    %s306 = scalar_lea.sflag [#allocation3], 1
    %307 = vsyncpa %s306, 1
    %308 = vsyncpa [#allocation6], 1
    %s309 = scalar_lea.sflag [#allocation6], 1
    %310 = vsyncpa %s309, 1
    %311 = vsyncpa [#allocation4], 1
    %s312 = scalar_lea.sflag [#allocation4], 1
    %313 = vsyncpa %s312, 1

</llo_original>
